<compile_context>
chip_gen: v6e
topology: v6e:2x2x1
jax: 0.10.0
libtpu: 0.0.40
codegen_flags: <defaults>
</compile_context>

<pallas_src>
import jax
import jax.numpy as jnp
from jax.experimental import pallas as pl
from jax.experimental.pallas import tpu as pltpu

# Deterministic "quantization parameters" (module stores these as python floats)
QBIT = 8
ACT_SCALE = 0.02
OUTPUT_SCALE = 0.015
QMIN = float(-(2 ** (QBIT - 1)))       # -128 (never binds after ReLU, see kernel)
QMAX = float(2 ** (QBIT - 1) - 1)      # 127

_COLS = 1024          # lane-dense last dim (multiple of 128)
_ROW_TILE = 512       # ~2.5 MiB per double-buffered tile (int8 in + f32 out)


def _quant_relu_kernel(x_ref, o_ref):
    # Elementwise hot path: ReLU -> rescale -> round -> clamp.
    # Inputs are int8-range quantized activations, so float32 math is exact
    # (values << 2^24).
    x = x_ref[...].astype(jnp.float32)
    y = jnp.maximum(x, 0.0) * (ACT_SCALE / OUTPUT_SCALE)
    # ReLU output is >= 0 and the scale ratio is positive, so the lower clamp
    # (QMIN) can never bind; only the upper clamp is needed.
    o_ref[...] = jnp.minimum(jnp.round(y), QMAX)


def quantized_relu(x_nchw: jax.Array) -> jax.Array:
    """x_nchw: int8 (or any int) NCHW quantized activations -> float32 NCHW output."""
    orig_shape = x_nchw.shape
    total = x_nchw.size

    # Flatten and pad to a lane-dense (rows, _COLS) slab; pad rows so every
    # grid block is full (no masked partial stores anywhere).
    rows = pl.cdiv(total, _COLS)
    if rows <= _ROW_TILE:
        tr = rows                          # single block; equals full dim -> OK
    else:
        tr = _ROW_TILE                     # multiple of 8
        rows = pl.cdiv(rows, tr) * tr
    padded_total = rows * _COLS

    flat = x_nchw.reshape(-1)
    if padded_total != total:
        flat = jnp.pad(flat, (0, padded_total - total))
    x2d = flat.reshape(rows, _COLS)

    in_bytes = padded_total * x2d.dtype.itemsize
    out_bytes = padded_total * 4

    out2d = pl.pallas_call(
        _quant_relu_kernel,
        out_shape=jax.ShapeDtypeStruct((rows, _COLS), jnp.float32),
        grid=(rows // tr,),
        in_specs=[pl.BlockSpec((tr, _COLS), lambda i: (i, 0))],
        out_specs=pl.BlockSpec((tr, _COLS), lambda i: (i, 0)),
        compiler_params=pltpu.CompilerParams(
            dimension_semantics=("parallel",),   # v7x: shard tiles across 2 TCs
        ),
        cost_estimate=pl.CostEstimate(
            flops=3 * padded_total,
            transcendentals=0,
            bytes_accessed=in_bytes + out_bytes,
        ),
    )(x2d)

    return out2d.reshape(-1)[:total].reshape(orig_shape)


def _reference(x_nchw: jax.Array) -> jax.Array:
    # Pure-JAX reference mirroring the PyTorch forward.
    x = x_nchw.astype(jnp.float32)
    y = jnp.maximum(x, 0.0) * ACT_SCALE / OUTPUT_SCALE
    return jnp.clip(jnp.round(y), QMIN, QMAX)


if __name__ == "__main__":
    key = jax.random.PRNGKey(0)
    # int8 quantized activations (values in [-128, 127]), NCHW layout.
    x = jax.random.randint(
        key, (2, 4, 16, 16), minval=-128, maxval=128, dtype=jnp.int32
    ).astype(jnp.int8)

    out = quantized_relu(x)
    out = jax.block_until_ready(out)

    ref = _reference(x)
    assert out.shape == (2, 4, 16, 16)
    assert out.dtype == jnp.float32
    assert bool(jnp.allclose(out, ref, atol=1e-5)), "mismatch vs reference"

    print("KERNEL_OK")
</pallas_src>

<mosaic_0001>
module attributes {stable_mosaic.version = 11 : i64} {
  func.func @_quant_relu_kernel(%arg0: i32, %arg1: memref<2x1024xi8, #tpu.memory_space<vmem>>, %arg2: memref<2x1024xf32, #tpu.memory_space<vmem>>) attributes {dimension_semantics = [#tpu.dimension_semantics<parallel>], iteration_bounds = array<i64: 1>, scalar_prefetch = 0 : i64, scratch_operands = 0 : i64, tpu.core_type = #tpu.core_type<tc>, window_params = [{transform_indices = @transform_0, window_bounds = array<i64: 2, 1024>}, {transform_indices = @transform_1, window_bounds = array<i64: 2, 1024>}]} {
    %c0 = arith.constant 0 : index
    %c0_0 = arith.constant 0 : index
    %0 = vector.load %arg1[%c0, %c0_0] : memref<2x1024xi8, #tpu.memory_space<vmem>>, vector<2x1024xi8>
    %1 = arith.sitofp %0 : vector<2x1024xi8> to vector<2x1024xf32>
    %cst = arith.constant 0.000000e+00 : f32
    %2 = vector.broadcast %cst : f32 to vector<2x1024xf32>
    %3 = arith.maximumf %1, %2 : vector<2x1024xf32>
    %cst_1 = arith.constant 1.33333337 : f32
    %4 = vector.broadcast %cst_1 : f32 to vector<2x1024xf32>
    %5 = arith.mulf %3, %4 : vector<2x1024xf32>
    %6 = math.roundeven %5 : vector<2x1024xf32>
    %cst_2 = arith.constant 1.270000e+02 : f32
    %7 = vector.broadcast %cst_2 : f32 to vector<2x1024xf32>
    %8 = arith.minimumf %6, %7 : vector<2x1024xf32>
    %c0_3 = arith.constant 0 : index
    %c0_4 = arith.constant 0 : index
    %9 = vector.load %arg2[%c0_3, %c0_4] : memref<2x1024xf32, #tpu.memory_space<vmem>>, vector<2x1024xf32>
    tpu.vector_store %arg2[%c0_3, %c0_4], %8 {strides = array<i32>} : memref<2x1024xf32, #tpu.memory_space<vmem>>, vector<2x1024xf32>,
    return
  }
  func.func @transform_0(%arg0: i32) -> (i32, i32) {
    %c0_i32 = arith.constant 0 : i32
    %c0_i32_0 = arith.constant 0 : i32
    return %arg0, %c0_i32 : i32, i32
  }
  func.func @transform_1(%arg0: i32) -> (i32, i32) {
    %c0_i32 = arith.constant 0 : i32
    %c0_i32_0 = arith.constant 0 : i32
    return %arg0, %c0_i32 : i32, i32
  }
}

</mosaic_0001>

<llo_original>
// kernel: tpu_custom_call.1
$region0: #{tpu_custom_call.1}
  #allocation0 [shape = 'u32[]', space=smem, size = 0x4, offset = 0x4, fixed_abs, tag = 'smem constant byte address 0x4 - core index']
  #allocation1 [shape = 'u32[144,128]{1,0:T(1,128)}', space=vmem, size = 0x12000, scoped, tag = 'internal scratch']
  %s0 = inlined_call_operand.hbm [shape: s8[2,1024], index: 0, kind: input, shape index: {}]
  %s1 = inlined_call_operand.hbm [shape: f32[2,1024], index: 1, kind: output, shape index: {}]
  %s2 = sld [smem:[#allocation0]]
  $region18: #{tpu_custom_call.1} parent=0
    _
  %s4 = ssub.s32 1, %s2
  %s5 = scalar_select 0, %s4, %s2
  $region1: #{tpu_custom_call.1} parent=0
    #allocation2 [shape = 'u8[4096]{0}', space=vmem, size = 0x1000, scoped, tag = 'input window, operand 0, single buffered']
    #allocation3 [shape = 's32[1]{0}', space=sflag, size = 0x4, scoped, tag = 'scoped memory for tpu_custom_call.1']
    #allocation4 [shape = 's32[1]{0}', space=sflag, size = 0x4, scoped, tag = 'scoped memory for tpu_custom_call.1']
    #allocation5 [shape = 'u8[8192]{0}', space=vmem, size = 0x2000, scoped, tag = 'output window, operand 0, single buffered']
    %6 = vsyncpa [#allocation3], 0
    %7 = vsyncpa [#allocation4], 0
    // Predicated region
    $region2: #{tpu_custom_call.1} parent=1 // pred_check
      _
    $region3: #{tpu_custom_call.1} parent=1 // pred_check_branch
      %9 = sbr.rel (0) target = $region5
    $region4: #{tpu_custom_call.1} parent=1 // pred_region
      %s11 = ssub.s32 128, 128
      %12 = vsyncadd [#allocation3], %s11
      %s14 = sshll.u32 [#allocation2], 4
      %s15 = int_to_ptr.vmem [resolvable:$true] %s14
      %17 = dma.hbm_to_vmem [thread:$0]  %s0, 128, %s15, [#allocation3]
    $region5: #{tpu_custom_call.1} parent=1 // pred_fallthru
      _
    // Predicated region
    $region6: #{tpu_custom_call.1} parent=1 // pred_check
      _
    $region7: #{tpu_custom_call.1} parent=1 // pred_check_branch
      %19 = sbr.rel (0) target = $region9
    $region8: #{tpu_custom_call.1} parent=1 // pred_region
      %20 = dma.done [#allocation3], 128
    $region9: #{tpu_custom_call.1} parent=1 // pred_fallthru
      _
    %v21 = vld [vmem:[#allocation2] sm:$0xff]
    %v22 = vunpack.c.0.s8 %v21
    %v23 = vunpack.c.1.s8 %v21
    %v24 = vunpack.c.2.s8 %v21
    %v25 = vunpack.c.3.s8 %v21
    %v26 = vcvt.s32.f32 %v22
    %v27 = vcvt.s32.f32 %v23
    %v28 = vcvt.s32.f32 %v24
    %v29 = vcvt.s32.f32 %v25
    %v30 = vmax.f32 %v26, 0.0
    %v31 = vmax.f32 %v27, 0.0
    %v32 = vmax.f32 %v28, 0.0
    %v33 = vmax.f32 %v29, 0.0
    %v34 = vmul.f32 %v30, 1.3333334
    %v35 = vmul.f32 %v31, 1.3333334
    %v36 = vmul.f32 %v32, 1.3333334
    %v37 = vmul.f32 %v33, 1.3333334
    %v38 = vround.ne.pseudo %v34
    %v39 = vround.ne.pseudo %v35
    %v40 = vround.ne.pseudo %v36
    %v41 = vround.ne.pseudo %v37
    %v42 = vmin.f32 %v38, 127.0
    %v43 = vmin.f32 %v39, 127.0
    %v44 = vmin.f32 %v40, 127.0
    %v45 = vmin.f32 %v41, 127.0
    %v51 = vunpack.c.l.s4 1983009808
    %v52 = vunpack.c.0.s8 %v51
    %v53 = vlaneseq
    %v54 = vshrl.u32 %v53, 7
    %v55 = vsub.s32 %v52, %v54
    %v56 = vrot.slane %v42, %v55
    %v58 = vunpack.c.l.s4 1983009808
    %v59 = vunpack.c.0.s8 %v58
    %v60 = vlaneseq
    %v61 = vshrl.u32 %v60, 7
    %v62 = vsub.s32 %v59, %v61
    %v63 = vrot.slane %v43, %v62
    %v64 = vcombine.low %v56, %v63
    %v66 = vunpack.c.l.s4 1983009808
    %v67 = vunpack.c.0.s8 %v66
    %v68 = vlaneseq
    %v69 = vshrl.u32 %v68, 7
    %v70 = vsub.s32 %v67, %v69
    %v71 = vrot.slane %v44, %v70
    %v73 = vunpack.c.l.s4 1983009808
    %v74 = vunpack.c.0.s8 %v73
    %v75 = vlaneseq
    %v76 = vshrl.u32 %v75, 7
    %v77 = vsub.s32 %v74, %v76
    %v78 = vrot.slane %v45, %v77
    %v79 = vcombine.low %v71, %v78
    %82 = vst [vmem:[#allocation5] sm:$0xff] %v64
    %83 = vst [vmem:[#allocation5 + $0x8] sm:$0xff] %v79
    // Predicated region
    $region10: #{tpu_custom_call.1} parent=1 // pred_check
      _
    $region11: #{tpu_custom_call.1} parent=1 // pred_check_branch
      %85 = sbr.rel (0) target = $region13
    $region12: #{tpu_custom_call.1} parent=1 // pred_region
      %s87 = ssub.s32 256, 256
      %88 = vsyncadd [#allocation4], %s87
      %s90 = sshll.u32 [#allocation5], 4
      %s91 = int_to_ptr.vmem [resolvable:$true] %s90
      %93 = dma.vmem_to_hbm [thread:$0]  %s91, 256, %s1, [#allocation4]
    $region13: #{tpu_custom_call.1} parent=1 // pred_fallthru
      _
    // Predicated region
    $region14: #{tpu_custom_call.1} parent=1 // pred_check
      _
    $region15: #{tpu_custom_call.1} parent=1 // pred_check_branch
      %95 = sbr.rel (0) target = $region17
    $region16: #{tpu_custom_call.1} parent=1 // pred_region
      %96 = dma.done [#allocation4], 256
    $region17: #{tpu_custom_call.1} parent=1 // pred_fallthru
      _
    %97 = vsyncpa [#allocation3], 1
    %98 = vsyncpa [#allocation4], 1

</llo_original>
